<compile_context>
chip_gen: v7x
topology: tpu7x:2x2x1
jax: 0.10.0
libtpu: 0.0.40
codegen_flags: <defaults>
</compile_context>

<pallas_src>
import jax
import jax.numpy as jnp
from jax import lax
from jax.experimental import pallas as pl
from jax.experimental.pallas import tpu as pltpu


def _forward_kernel(x_ref, w_ref, b_ref, cw_ref, cb_ref, o_ref):
    # x_ref : (2, 2) f32 VMEM        x[k, j]
    # w_ref : (2, 2) f32 SMEM        linear weight W
    # b_ref : (2,)   f32 SMEM        linear bias b
    # cw_ref: (1,)   f32 SMEM        1x1-conv weight (scalar)
    # cb_ref: (1,)   f32 SMEM        1x1-conv bias   (scalar)
    cw = cw_ref[0]
    cb = cb_ref[0]

    # Fold the 1x1 conv (scale + shift) into the linear coefficients (scalar unit).
    w00 = w_ref[0, 0] * cw
    w01 = w_ref[0, 1] * cw
    w10 = w_ref[1, 0] * cw
    w11 = w_ref[1, 1] * cw
    bc0 = b_ref[0] * cw + cb
    bc1 = b_ref[1] * cw + cb

    # Coefficient planes built in-kernel (iota + select, pure VPU, no data movement).
    row = lax.broadcasted_iota(jnp.int32, (2, 2), 0)
    col = lax.broadcasted_iota(jnp.int32, (2, 2), 1)
    is_r0 = row == 0
    is_c0 = col == 0
    a0 = jnp.where(is_r0, w00, w10)        # cw*W[i,0]
    a1 = jnp.where(is_r0, w01, w11)        # cw*W[i,1]
    ac = jnp.where(is_r0, bc0, bc1)        # cw*b[i] + cb
    g0 = jnp.where(is_c0, w00, w10)        # cw*W[j,0]
    g1 = jnp.where(is_c0, w01, w11)        # cw*W[j,1]
    gc = jnp.where(is_c0, bc0, bc1)        # cw*b[j] + cb
    sgn_c = jnp.where(is_c0, 1.0, -1.0).astype(jnp.float32)
    sgn_r = jnp.where(is_r0, 1.0, -1.0).astype(jnp.float32)

    x = x_ref[...]                                   # (2, 2)
    x0 = jnp.broadcast_to(x[0:1, :], (2, 2))         # sublane broadcast of row 0
    x1 = jnp.broadcast_to(x[1:2, :], (2, 2))         # sublane broadcast of row 1

    # ---- Stage 1, carried transposed --------------------------------------
    # v1 = x^T ; v2 = v1 @ W^T + b ; v4 = conv(v2)
    #   T4[i,j] = v4[j,i] = (cw*W[i,0])*x[0,j] + (cw*W[i,1])*x[1,j] + (cw*b[i]+cb)
    t4 = a0 * x0 + a1 * x1 + ac

    # v6 flatten (no-op at batch 1); v7 = softmax over original dim 0 == axis 1 here.
    # Length-2 softmax closed form: sigmoid(x - swap_cols(x)).
    dcol = t4[:, 0:1] - t4[:, 1:2]                   # (2, 1)
    d1 = jnp.broadcast_to(dcol, (2, 2)) * sgn_c      # +/- difference per column
    t7 = 0.5 + 0.5 * jnp.tanh(0.5 * d1)
    # v8 = tanh ; v9 = permute(0,2,1): the carried transposed tensor IS v9.
    t8 = jnp.tanh(t7)

    # ---- Stage 2, natural layout -------------------------------------------
    # v10 = v9 @ W^T + b ; v12 = conv(v10)
    #   v12[i,j] = (cw*W[j,0])*t8[i,0] + (cw*W[j,1])*t8[i,1] + (cw*b[j]+cb)
    c0 = jnp.broadcast_to(t8[:, 0:1], (2, 2))        # lane broadcast of column 0
    c1 = jnp.broadcast_to(t8[:, 1:2], (2, 2))        # lane broadcast of column 1
    v12 = g0 * c0 + g1 * c1 + gc

    # v14 flatten (no-op); v15 = softmax(dim=0) == axis 0, closed form again.
    drow = v12[0:1, :] - v12[1:2, :]                 # (1, 2)
    d2 = jnp.broadcast_to(drow, (2, 2)) * sgn_r
    o_ref[...] = 0.5 + 0.5 * jnp.tanh(0.5 * d2)


def my_class_forward(x1, lin_w, lin_b, conv_w, conv_b):
    """x1: (1,2,2); lin_w: (2,2); lin_b: (2,); conv_w: (1,1,1,1); conv_b: (1,)."""
    x = x1.reshape(2, 2).astype(jnp.float32)
    w = lin_w.astype(jnp.float32)
    b = lin_b.astype(jnp.float32)
    cw = conv_w.reshape(1).astype(jnp.float32)
    cb = conv_b.reshape(1).astype(jnp.float32)

    return pl.pallas_call(
        _forward_kernel,
        out_shape=jax.ShapeDtypeStruct((2, 2), jnp.float32),
        in_specs=[
            pl.BlockSpec(memory_space=pltpu.MemorySpace.VMEM),   # x (vector data)
            pl.BlockSpec(memory_space=pltpu.MemorySpace.SMEM),   # W (scalar reads)
            pl.BlockSpec(memory_space=pltpu.MemorySpace.SMEM),   # b
            pl.BlockSpec(memory_space=pltpu.MemorySpace.SMEM),   # conv weight
            pl.BlockSpec(memory_space=pltpu.MemorySpace.SMEM),   # conv bias
        ],
        out_specs=pl.BlockSpec(memory_space=pltpu.MemorySpace.VMEM),
    )(x, w, b, cw, cb)


def _reference(x1, lin_w, lin_b, conv_w, conv_b):
    """Pure-jnp reference of the same (reinterpreted) forward pass."""
    x = x1.reshape(2, 2).astype(jnp.float32)
    w = lin_w.astype(jnp.float32)
    b = lin_b.astype(jnp.float32)
    cw = conv_w.reshape(()).astype(jnp.float32)
    cb = conv_b.reshape(()).astype(jnp.float32)

    v1 = x.T
    v2 = v1 @ w.T + b
    v4 = v2 * cw + cb
    v7 = jax.nn.softmax(v4, axis=0)
    v8 = jnp.tanh(v7)
    v9 = v8.T
    v10 = v9 @ w.T + b
    v12 = v10 * cw + cb
    return jax.nn.softmax(v12, axis=0)


if __name__ == "__main__":
    key = jax.random.PRNGKey(0)
    k_x, k_w, k_b, k_cw, k_cb = jax.random.split(key, 5)

    # x1 = torch.randn(1, 2, 2); parameters shaped per __init__.
    x1 = jax.random.normal(k_x, (1, 2, 2), dtype=jnp.float32)
    lin_w = jax.random.normal(k_w, (2, 2), dtype=jnp.float32) * 0.5
    lin_b = jax.random.normal(k_b, (2,), dtype=jnp.float32) * 0.5
    conv_w = jax.random.normal(k_cw, (1, 1, 1, 1), dtype=jnp.float32) * 0.5
    conv_b = jax.random.normal(k_cb, (1,), dtype=jnp.float32) * 0.5

    out = my_class_forward(x1, lin_w, lin_b, conv_w, conv_b)
    out = jax.block_until_ready(out)

    assert out.shape == (2, 2)
    # Final softmax over dim 0: each column sums to 1 (exact closed form).
    assert jnp.allclose(jnp.sum(out, axis=0), jnp.ones((2,)), atol=1e-6)
    # Cross-check against the pure-jnp reference.
    ref = _reference(x1, lin_w, lin_b, conv_w, conv_b)
    assert jnp.allclose(out, ref, atol=1e-5, rtol=1e-5), (out, ref)
    print("KERNEL_OK")
</pallas_src>

<mosaic_0001>
module attributes {stable_mosaic.version = 11 : i64} {
  func.func @_forward_kernel(%arg0: memref<2x2xf32, #tpu.memory_space<vmem>>, %arg1: memref<2x2xf32, #tpu.memory_space<smem>>, %arg2: memref<2xf32, #tpu.memory_space<smem>>, %arg3: memref<1xf32, #tpu.memory_space<smem>>, %arg4: memref<1xf32, #tpu.memory_space<smem>>, %arg5: memref<2x2xf32, #tpu.memory_space<vmem>>) attributes {dimension_semantics = [], scalar_prefetch = 0 : i64, scratch_operands = 0 : i64, tpu.core_type = #tpu.core_type<tc>} {
    %c0 = arith.constant 0 : index
    %0 = memref.load %arg3[%c0] : memref<1xf32, #tpu.memory_space<smem>>
    %c0_0 = arith.constant 0 : index
    %1 = memref.load %arg4[%c0_0] : memref<1xf32, #tpu.memory_space<smem>>
    %c0_1 = arith.constant 0 : index
    %c0_2 = arith.constant 0 : index
    %2 = memref.load %arg1[%c0_1, %c0_2] : memref<2x2xf32, #tpu.memory_space<smem>>
    %3 = arith.mulf %2, %0 : f32
    %c0_3 = arith.constant 0 : index
    %c1 = arith.constant 1 : index
    %4 = memref.load %arg1[%c0_3, %c1] : memref<2x2xf32, #tpu.memory_space<smem>>
    %5 = arith.mulf %4, %0 : f32
    %c1_4 = arith.constant 1 : index
    %c0_5 = arith.constant 0 : index
    %6 = memref.load %arg1[%c1_4, %c0_5] : memref<2x2xf32, #tpu.memory_space<smem>>
    %7 = arith.mulf %6, %0 : f32
    %c1_6 = arith.constant 1 : index
    %c1_7 = arith.constant 1 : index
    %8 = memref.load %arg1[%c1_6, %c1_7] : memref<2x2xf32, #tpu.memory_space<smem>>
    %9 = arith.mulf %8, %0 : f32
    %c0_8 = arith.constant 0 : index
    %10 = memref.load %arg2[%c0_8] : memref<2xf32, #tpu.memory_space<smem>>
    %11 = arith.mulf %10, %0 : f32
    %12 = arith.addf %11, %1 : f32
    %c1_9 = arith.constant 1 : index
    %13 = memref.load %arg2[%c1_9] : memref<2xf32, #tpu.memory_space<smem>>
    %14 = arith.mulf %13, %0 : f32
    %15 = arith.addf %14, %1 : f32
    %16 = tpu.iota {dimensions = array<i32: 0>} : vector<2x2xi32>
    %17 = tpu.iota {dimensions = array<i32: 1>} : vector<2x2xi32>
    %c0_i32 = arith.constant 0 : i32
    %18 = vector.broadcast %c0_i32 : i32 to vector<2x2xi32>
    %19 = arith.cmpi eq, %16, %18 : vector<2x2xi32>
    %c0_i32_10 = arith.constant 0 : i32
    %20 = vector.broadcast %c0_i32_10 : i32 to vector<2x2xi32>
    %21 = arith.cmpi eq, %17, %20 : vector<2x2xi32>
    %22 = vector.broadcast %3 : f32 to vector<2x2xf32>
    %23 = vector.broadcast %7 : f32 to vector<2x2xf32>
    %24 = arith.select %19, %22, %23 : vector<2x2xi1>, vector<2x2xf32>
    %25 = vector.broadcast %5 : f32 to vector<2x2xf32>
    %26 = vector.broadcast %9 : f32 to vector<2x2xf32>
    %27 = arith.select %19, %25, %26 : vector<2x2xi1>, vector<2x2xf32>
    %28 = vector.broadcast %12 : f32 to vector<2x2xf32>
    %29 = vector.broadcast %15 : f32 to vector<2x2xf32>
    %30 = arith.select %19, %28, %29 : vector<2x2xi1>, vector<2x2xf32>
    %31 = vector.broadcast %3 : f32 to vector<2x2xf32>
    %32 = vector.broadcast %7 : f32 to vector<2x2xf32>
    %33 = arith.select %21, %31, %32 : vector<2x2xi1>, vector<2x2xf32>
    %34 = vector.broadcast %5 : f32 to vector<2x2xf32>
    %35 = vector.broadcast %9 : f32 to vector<2x2xf32>
    %36 = arith.select %21, %34, %35 : vector<2x2xi1>, vector<2x2xf32>
    %37 = vector.broadcast %12 : f32 to vector<2x2xf32>
    %38 = vector.broadcast %15 : f32 to vector<2x2xf32>
    %39 = arith.select %21, %37, %38 : vector<2x2xi1>, vector<2x2xf32>
    %cst = arith.constant 1.000000e+00 : f32
    %cst_11 = arith.constant -1.000000e+00 : f32
    %40 = vector.broadcast %cst : f32 to vector<2x2xf32>
    %41 = vector.broadcast %cst_11 : f32 to vector<2x2xf32>
    %42 = arith.select %21, %40, %41 : vector<2x2xi1>, vector<2x2xf32>
    %cst_12 = arith.constant 1.000000e+00 : f32
    %cst_13 = arith.constant -1.000000e+00 : f32
    %43 = vector.broadcast %cst_12 : f32 to vector<2x2xf32>
    %44 = vector.broadcast %cst_13 : f32 to vector<2x2xf32>
    %45 = arith.select %19, %43, %44 : vector<2x2xi1>, vector<2x2xf32>
    %c0_14 = arith.constant 0 : index
    %c0_15 = arith.constant 0 : index
    %46 = vector.load %arg0[%c0_14, %c0_15] : memref<2x2xf32, #tpu.memory_space<vmem>>, vector<2x2xf32>
    %47 = vector.extract_strided_slice %46 {offsets = [0, 0], sizes = [1, 2], strides = [1, 1]} : vector<2x2xf32> to vector<1x2xf32>
    %48 = vector.shape_cast %47 : vector<1x2xf32> to vector<1x2xf32>
    %49 = vector.broadcast %48 : vector<1x2xf32> to vector<2x2xf32>
    %50 = vector.extract_strided_slice %46 {offsets = [1, 0], sizes = [1, 2], strides = [1, 1]} : vector<2x2xf32> to vector<1x2xf32>
    %51 = vector.shape_cast %50 : vector<1x2xf32> to vector<1x2xf32>
    %52 = vector.broadcast %51 : vector<1x2xf32> to vector<2x2xf32>
    %53 = arith.mulf %24, %49 : vector<2x2xf32>
    %54 = arith.mulf %27, %52 : vector<2x2xf32>
    %55 = arith.addf %53, %54 : vector<2x2xf32>
    %56 = arith.addf %55, %30 : vector<2x2xf32>
    %57 = vector.extract_strided_slice %56 {offsets = [0, 0], sizes = [2, 1], strides = [1, 1]} : vector<2x2xf32> to vector<2x1xf32>
    %58 = vector.extract_strided_slice %56 {offsets = [0, 1], sizes = [2, 1], strides = [1, 1]} : vector<2x2xf32> to vector<2x1xf32>
    %59 = arith.subf %57, %58 : vector<2x1xf32>
    %60 = vector.shape_cast %59 : vector<2x1xf32> to vector<2x1xf32>
    %61 = vector.broadcast %60 : vector<2x1xf32> to vector<2x2xf32>
    %62 = arith.mulf %61, %42 : vector<2x2xf32>
    %cst_16 = arith.constant 5.000000e-01 : f32
    %63 = vector.broadcast %cst_16 : f32 to vector<2x2xf32>
    %64 = arith.mulf %63, %62 : vector<2x2xf32>
    %65 = math.tanh %64 : vector<2x2xf32>
    %cst_17 = arith.constant 5.000000e-01 : f32
    %66 = vector.broadcast %cst_17 : f32 to vector<2x2xf32>
    %67 = arith.mulf %66, %65 : vector<2x2xf32>
    %cst_18 = arith.constant 5.000000e-01 : f32
    %68 = vector.broadcast %cst_18 : f32 to vector<2x2xf32>
    %69 = arith.addf %68, %67 : vector<2x2xf32>
    %70 = math.tanh %69 : vector<2x2xf32>
    %71 = vector.extract_strided_slice %70 {offsets = [0, 0], sizes = [2, 1], strides = [1, 1]} : vector<2x2xf32> to vector<2x1xf32>
    %72 = vector.shape_cast %71 : vector<2x1xf32> to vector<2x1xf32>
    %73 = vector.broadcast %72 : vector<2x1xf32> to vector<2x2xf32>
    %74 = vector.extract_strided_slice %70 {offsets = [0, 1], sizes = [2, 1], strides = [1, 1]} : vector<2x2xf32> to vector<2x1xf32>
    %75 = vector.shape_cast %74 : vector<2x1xf32> to vector<2x1xf32>
    %76 = vector.broadcast %75 : vector<2x1xf32> to vector<2x2xf32>
    %77 = arith.mulf %33, %73 : vector<2x2xf32>
    %78 = arith.mulf %36, %76 : vector<2x2xf32>
    %79 = arith.addf %77, %78 : vector<2x2xf32>
    %80 = arith.addf %79, %39 : vector<2x2xf32>
    %81 = vector.extract_strided_slice %80 {offsets = [0, 0], sizes = [1, 2], strides = [1, 1]} : vector<2x2xf32> to vector<1x2xf32>
    %82 = vector.extract_strided_slice %80 {offsets = [1, 0], sizes = [1, 2], strides = [1, 1]} : vector<2x2xf32> to vector<1x2xf32>
    %83 = arith.subf %81, %82 : vector<1x2xf32>
    %84 = vector.shape_cast %83 : vector<1x2xf32> to vector<1x2xf32>
    %85 = vector.broadcast %84 : vector<1x2xf32> to vector<2x2xf32>
    %86 = arith.mulf %85, %45 : vector<2x2xf32>
    %cst_19 = arith.constant 5.000000e-01 : f32
    %87 = vector.broadcast %cst_19 : f32 to vector<2x2xf32>
    %88 = arith.mulf %87, %86 : vector<2x2xf32>
    %89 = math.tanh %88 : vector<2x2xf32>
    %cst_20 = arith.constant 5.000000e-01 : f32
    %90 = vector.broadcast %cst_20 : f32 to vector<2x2xf32>
    %91 = arith.mulf %90, %89 : vector<2x2xf32>
    %cst_21 = arith.constant 5.000000e-01 : f32
    %92 = vector.broadcast %cst_21 : f32 to vector<2x2xf32>
    %93 = arith.addf %92, %91 : vector<2x2xf32>
    %c0_22 = arith.constant 0 : index
    %c0_23 = arith.constant 0 : index
    %94 = vector.load %arg5[%c0_22, %c0_23] : memref<2x2xf32, #tpu.memory_space<vmem>>, vector<2x2xf32>
    tpu.vector_store %arg5[%c0_22, %c0_23], %93 {strides = array<i32>} : memref<2x2xf32, #tpu.memory_space<vmem>>, vector<2x2xf32>,
    return
  }
}

</mosaic_0001>

<llo_original>
// kernel: tpu_custom_call.1
$region0: #{tpu_custom_call.1}
  #allocation0 [shape = 'u32[]', space=smem, size = 0x4, offset = 0x4, fixed_abs, tag = 'smem constant byte address 0x4 - core index']
  #allocation1 [shape = 'u32[144,128]{1,0:T(1,128)}', space=vmem, size = 0x12000, scoped, tag = 'internal scratch']
  #allocation2 [shape = 'f32[1]{0:T(128)S(6)}', space=smem, size = 0x200, scoped, tag = 'scoped memory for tpu_custom_call.1']
  #allocation3 [shape = 'f32[1]{0:T(128)S(6)}', space=smem, size = 0x200, scoped, tag = 'scoped memory for tpu_custom_call.1']
  %s0 = inlined_call_operand.vmem [shape: f32[2,2], index: 0, kind: input, shape index: {}]
  %s1 = inlined_call_operand.vmem [shape: f32[2,2], index: 1, kind: input, shape index: {}]
  %s2 = inlined_call_operand.vmem [shape: f32[2], index: 2, kind: input, shape index: {}]
  %s3 = inlined_call_operand.<no memory space> [shape: f32[1], index: 3, kind: input, shape index: {}]
  %s4 = inlined_call_operand.<no memory space> [shape: f32[1], index: 4, kind: input, shape index: {}]
  %s5 = inlined_call_operand.hbm [shape: f32[2,2], index: 5, kind: output, shape index: {}]
  %s6 = sld [smem:[#allocation0]]
  $region38: #{tpu_custom_call.1} parent=0
    _
  %s8 = ssub.s32 1, %s6
  %s9 = scalar_select 0, %s8, %s6
  %10 = sst [smem:[#allocation2]] %s3
  %11 = sst [smem:[#allocation3]] %s4
  $region1: #{tpu_custom_call.1} parent=0
    #allocation4 [shape = 'u8[1024]{0}', space=smem, size = 0x400, scoped, tag = 'input window, operand 1, single buffered']
    #allocation5 [shape = 's32[1]{0}', space=sflag, size = 0x4, scoped, tag = 'scoped memory for tpu_custom_call.1']
    #allocation6 [shape = 's32[1]{0}', space=sflag, size = 0x4, scoped, tag = 'scoped memory for tpu_custom_call.1']
    #allocation7 [shape = 'u8[512]{0}', space=smem, size = 0x200, scoped, tag = 'input window, operand 2, single buffered']
    #allocation8 [shape = 's32[1]{0}', space=sflag, size = 0x4, scoped, tag = 'scoped memory for tpu_custom_call.1']
    #allocation9 [shape = 'u8[1024]{0}', space=vmem, size = 0x400, scoped, tag = 'output window, operand 0, single buffered']
    %12 = vsyncpa [#allocation6], 0
    %13 = vsyncpa [#allocation8], 0
    %14 = vsyncpa [#allocation5], 0
    // Predicated region
    $region2: #{tpu_custom_call.1} parent=1 // pred_check
      _
    $region3: #{tpu_custom_call.1} parent=1 // pred_check_branch
      %16 = sbr.rel (0) target = $region5
    $region4: #{tpu_custom_call.1} parent=1 // pred_region
      _
    $region5: #{tpu_custom_call.1} parent=1 // pred_fallthru
      _
    // Predicated region
    $region6: #{tpu_custom_call.1} parent=1 // pred_check
      _
    $region7: #{tpu_custom_call.1} parent=1 // pred_check_branch
      %18 = sbr.rel (0) target = $region9
    $region8: #{tpu_custom_call.1} parent=1 // pred_region
      %s20 = ssub.s32 32, 32
      %21 = vsyncadd [#allocation6], %s20
      %s23 = sshll.u32 %s1, 4
      %s24 = int_to_ptr.vmem [resolvable:$true] %s23
      %26 = dma.vmem_to_smem %s24, 32, [#allocation4], [#allocation6]
    $region9: #{tpu_custom_call.1} parent=1 // pred_fallthru
      _
    // Predicated region
    $region10: #{tpu_custom_call.1} parent=1 // pred_check
      _
    $region11: #{tpu_custom_call.1} parent=1 // pred_check_branch
      %28 = sbr.rel (0) target = $region13
    $region12: #{tpu_custom_call.1} parent=1 // pred_region
      %s30 = ssub.s32 16, 16
      %31 = vsyncadd [#allocation8], %s30
      %s33 = sshll.u32 %s2, 4
      %s34 = int_to_ptr.vmem [resolvable:$true] %s33
      %36 = dma.vmem_to_smem %s34, 16, [#allocation7], [#allocation8]
    $region13: #{tpu_custom_call.1} parent=1 // pred_fallthru
      _
    // Predicated region
    $region14: #{tpu_custom_call.1} parent=1 // pred_check
      _
    $region15: #{tpu_custom_call.1} parent=1 // pred_check_branch
      %38 = sbr.rel (0) target = $region17
    $region16: #{tpu_custom_call.1} parent=1 // pred_region
      _
    $region17: #{tpu_custom_call.1} parent=1 // pred_fallthru
      _
    // Predicated region
    $region18: #{tpu_custom_call.1} parent=1 // pred_check
      _
    $region19: #{tpu_custom_call.1} parent=1 // pred_check_branch
      %40 = sbr.rel (0) target = $region21
    $region20: #{tpu_custom_call.1} parent=1 // pred_region
      _
    $region21: #{tpu_custom_call.1} parent=1 // pred_fallthru
      _
    // Predicated region
    $region22: #{tpu_custom_call.1} parent=1 // pred_check
      _
    $region23: #{tpu_custom_call.1} parent=1 // pred_check_branch
      %42 = sbr.rel (0) target = $region25
    $region24: #{tpu_custom_call.1} parent=1 // pred_region
      %43 = dma.done [#allocation6], 32
    $region25: #{tpu_custom_call.1} parent=1 // pred_fallthru
      _
    // Predicated region
    $region26: #{tpu_custom_call.1} parent=1 // pred_check
      _
    $region27: #{tpu_custom_call.1} parent=1 // pred_check_branch
      %45 = sbr.rel (0) target = $region29
    $region28: #{tpu_custom_call.1} parent=1 // pred_region
      %46 = dma.done [#allocation8], 16
    $region29: #{tpu_custom_call.1} parent=1 // pred_fallthru
      _
    %47 = sfence
    %s48 = sld [smem:[#allocation2]]
    %s49 = sld [smem:[#allocation3]]
    %s50 = sld [smem:[#allocation4]]
    %s51 = smul.f32 %s50, %s48
    %s52 = sld [smem:[#allocation4 + $0x1]]
    %s53 = smul.f32 %s52, %s48
    %s54 = sld [smem:[#allocation4 + $0x80]]
    %s55 = smul.f32 %s54, %s48
    %s56 = sld [smem:[#allocation4 + $0x81]]
    %s57 = smul.f32 %s56, %s48
    %s58 = sld [smem:[#allocation7]]
    %s59 = smul.f32 %s58, %s48
    %s60 = sadd.f32 %s59, %s49
    %s61 = sld [smem:[#allocation7 + $0x1]]
    %s62 = smul.f32 %s61, %s48
    %s63 = sadd.f32 %s62, %s49
    %v64 = vlaneseq
    %v65 = vshrl.u32 %v64, 7
    %v66 = vlaneseq
    %v67 = vand.u32 %v66, 127
    %vm68 = vcmp.eq.s32.totalorder %v65, 0
    %vm69 = vcmp.eq.s32.totalorder %v67, 0
    %v70 = vstv %s51
    %v71 = vstv %s55
    %v72 = vsel %vm68, %v70, %v71
    %v73 = vstv %s53
    %v74 = vstv %s57
    %v75 = vsel %vm68, %v73, %v74
    %v76 = vstv %s60
    %v77 = vstv %s63
    %v78 = vsel %vm68, %v76, %v77
    %v79 = vsel %vm69, %v70, %v71
    %v80 = vsel %vm69, %v73, %v74
    %v81 = vsel %vm69, %v76, %v77
    %v82 = vsel %vm69, 1.0, -1.0
    %v83 = vsel %vm68, 1.0, -1.0
    %v84 = vld [vmem:[%s0] sm:$0x3]
    %v85 = vlaneseq
    %v86 = vshrl.u32 %v85, 7
    %v87 = vsub.s32 0, %v86
    %v88 = vrot.slane %v84, %v87
    %v89 = vlaneseq
    %v90 = vshrl.u32 %v89, 7
    %v91 = vsub.s32 1, %v90
    %v92 = vrot.slane %v84, %v91
    %v93 = vmul.f32 %v72, %v88
    %v94 = vmul.f32 %v75, %v92
    %v95 = vadd.f32 %v93, %v94
    %v96 = vadd.f32 %v95, %v78
    %98 = vrot.lane.b32.xlu0 %v96, 127
    %v99 = vpop.permute.xlu0 %98
    %v101 = vsub.f32 %v96, %v99
    %103 = vset.pattern.permute.xlu0 0
    %104 = vperm.xlu0 %103, %v101
    %v105 = vpop.permute.xlu0 %104
    %v107 = vmul.f32 %v105, %v82
    %v108 = vmul.f32 %v107, 0.5
    %v109 = vtanh.pop %v108
    %v110 = vmul.f32 %v109, 0.5
    %v111 = vadd.f32 %v110, 0.5
    %v112 = vtanh.pop %v111
    %114 = vset.pattern.permute.xlu0 0
    %115 = vperm.xlu0 %114, %v112
    %v116 = vpop.permute.xlu0 %115
    %118 = vset.pattern.permute.xlu0 1
    %119 = vperm.xlu0 %118, %v112
    %v120 = vpop.permute.xlu0 %119
    %v122 = vmul.f32 %v79, %v116
    %v123 = vmul.f32 %v80, %v120
    %v124 = vadd.f32 %v122, %v123
    %v125 = vadd.f32 %v124, %v81
    %v127 = vrot.slane %v125, 1
    %v129 = vsub.f32 %v125, %v127
    %v130 = vlaneseq
    %v131 = vshrl.u32 %v130, 7
    %v132 = vsub.s32 0, %v131
    %v133 = vrot.slane %v129, %v132
    %v134 = vmul.f32 %v133, %v83
    %v135 = vmul.f32 %v134, 0.5
    %v136 = vtanh.pop %v135
    %v137 = vmul.f32 %v136, 0.5
    %v138 = vadd.f32 %v137, 0.5
    %vm139 = vcmask 9216
    %140 = vst.msk [vmem:[#allocation9] sm:$0x3] %vm139, %v138
    // Predicated region
    $region30: #{tpu_custom_call.1} parent=1 // pred_check
      _
    $region31: #{tpu_custom_call.1} parent=1 // pred_check_branch
      %142 = sbr.rel (0) target = $region33
    $region32: #{tpu_custom_call.1} parent=1 // pred_region
      %s144 = ssub.s32 32, 32
      %145 = vsyncadd [#allocation5], %s144
      %s147 = sshll.u32 [#allocation9], 4
      %s148 = int_to_ptr.vmem [resolvable:$true] %s147
      %150 = dma.vmem_to_hbm [thread:$0]  %s148, 32, %s5, [#allocation5]
    $region33: #{tpu_custom_call.1} parent=1 // pred_fallthru
      _
    // Predicated region
    $region34: #{tpu_custom_call.1} parent=1 // pred_check
      _
    $region35: #{tpu_custom_call.1} parent=1 // pred_check_branch
      %152 = sbr.rel (0) target = $region37
    $region36: #{tpu_custom_call.1} parent=1 // pred_region
      %153 = dma.done [#allocation5], 32
    $region37: #{tpu_custom_call.1} parent=1 // pred_fallthru
      _
    %154 = vsyncpa [#allocation5], 1
    %155 = vsyncpa [#allocation6], 1
    %156 = vsyncpa [#allocation8], 1

</llo_original>
